<compile_context>
chip_gen: v7x
topology: tpu7x:2x2x1
jax: 0.10.0
libtpu: 0.0.40
codegen_flags: <defaults>
</compile_context>

<pallas_src>
import functools

import numpy as np
import jax
import jax.numpy as jnp
from jax import lax
from jax.experimental import pallas as pl
from jax.experimental.pallas import tpu as pltpu


def _conv3x3_same_kernel(x_ref, w_ref, b_ref, m_ref, o_ref, col_ref, *, W):
    """3x3 stride-1 'same' conv for an Nb-batch block in NC(HW) layout.

    x_ref   : (Nb, Cp,  H*W)     input block, Cp = Cin padded to sublane tile
    w_ref   : (Cout, 9*Cp)       im2col weights, k = (dy*3 + dx)*Cp + ci
    b_ref   : (Cout, 1)          bias
    m_ref   : (9, H*W)           precomputed border masks (1.0 valid, 0.0 pad)
    o_ref   : (Nb, Cout, H*W)    output block, lane axis = H*W (lane-dense)
    col_ref : (9*Cp, Nb*H*W)     VMEM scratch im2col slab (tile-aligned)
    """
    Nb, Cp, HW = x_ref.shape
    Cout = o_ref.shape[1]

    # --- Assemble the im2col slab with aligned full-tile stores. -----------
    for b in range(Nb):
        x = x_ref[b]                                       # (Cp, HW)
        for dy in range(3):
            for dx in range(3):
                tap = dy * 3 + dx
                s = (dy - 1) * W + (dx - 1)                # tap reads x[p + s]
                if s == 0:
                    shifted = x
                else:
                    # roll(x, k)[p] = x[(p - k) % HW]; pick k so we read x[p+s].
                    shifted = pltpu.roll(x, (-s) % HW, 1)
                    # Zero the positions where the tap fell off the image
                    # (typed multiply; mask was hoisted to the wrapper).
                    shifted = shifted * m_ref[pl.ds(tap, 1), :]
                col_ref[pl.ds(tap * Cp, Cp), pl.ds(b * HW, HW)] = shifted

    # --- One MXU contraction: (Cout, 9*Cp) x (9*Cp, Nb*HW). ----------------
    acc = jnp.dot(w_ref[...], col_ref[...], preferred_element_type=jnp.float32)
    acc = acc + b_ref[...].astype(jnp.float32)             # (Cout, Nb*HW)

    # Lane-dense stores (HW multiple of 128 at these sizes).
    for b in range(Nb):
        o_ref[b] = acc[:, b * HW:(b + 1) * HW].astype(o_ref.dtype)


def _border_masks(H, W, dtype):
    """(9, H*W) masks: 1 where the (dy,dx) tap stays inside the image."""
    HW = H * W
    pos = np.arange(HW)
    h_pos, w_pos = pos // W, pos % W
    masks = np.ones((9, HW), np.float32)
    for dy in range(3):
        for dx in range(3):
            oy, ox = dy - 1, dx - 1
            valid = np.ones(HW, bool)
            if oy < 0:
                valid &= h_pos >= -oy
            if oy > 0:
                valid &= h_pos < H - oy
            if ox < 0:
                valid &= w_pos >= -ox
            if ox > 0:
                valid &= w_pos < W - ox
            masks[dy * 3 + dx] = valid
    return jnp.asarray(masks, dtype=dtype)


def _pick_batch_block(N, cap=8):
    """Largest divisor of N that keeps >= 2 grid steps (v7x megacore), <= cap."""
    limit = min(cap, N // 2) if N >= 2 else 1
    nb = 1
    for d in range(1, max(limit, 1) + 1):
        if N % d == 0:
            nb = d
    return nb


def conv2d_same_3x3(x_nchw, weight, bias, *, vmem_limit_bytes=32 * 1024 * 1024):
    """Equivalent of nn.Conv2d(C, C, 3, padding='same') forward.

    x_nchw : (N, Cin, H, W)
    weight : (Cout, Cin, 3, 3)   (PyTorch OIHW layout)
    bias   : (Cout,)
    returns (N, Cout, H, W)
    """
    N, Cin, H, W = x_nchw.shape
    Cout = weight.shape[0]
    HW = H * W
    Cp = ((Cin + 7) // 8) * 8          # channel count padded to f32 sublane tile

    # Metadata-only H*W collapse; tiny zero-pad of the channel axis to Cp.
    x_flat = x_nchw.reshape(N, Cin, HW)
    if Cp != Cin:
        x_flat = jnp.pad(x_flat, ((0, 0), (0, Cp - Cin), (0, 0)))

    # OIHW -> (O, ky, kx, I), pad I -> Cp, flatten to (O, 9*Cp); matches the
    # kernel tap order k = (dy*3 + dx)*Cp + ci.  Padded channels are zero.
    w_t = jnp.transpose(weight, (0, 2, 3, 1))
    if Cp != Cin:
        w_t = jnp.pad(w_t, ((0, 0), (0, 0), (0, 0), (0, Cp - Cin)))
    w_mat = w_t.reshape(Cout, 9 * Cp)
    b2d = bias.reshape(Cout, 1)

    masks = _border_masks(H, W, x_nchw.dtype)              # hoisted constants

    Nb = _pick_batch_block(N)
    grid = (N // Nb,)

    kernel = functools.partial(_conv3x3_same_kernel, W=W)

    out_flat = pl.pallas_call(
        kernel,
        out_shape=jax.ShapeDtypeStruct((N, Cout, HW), x_nchw.dtype),
        grid_spec=pltpu.PrefetchScalarGridSpec(
            num_scalar_prefetch=0,
            grid=grid,
            in_specs=[
                pl.BlockSpec((Nb, Cp, HW), lambda n: (n, 0, 0)),     # batch block
                pl.BlockSpec((Cout, 9 * Cp), lambda n: (0, 0)),      # resident weights
                pl.BlockSpec((Cout, 1), lambda n: (0, 0)),           # resident bias
                pl.BlockSpec((9, HW), lambda n: (0, 0)),             # resident masks
            ],
            out_specs=pl.BlockSpec((Nb, Cout, HW), lambda n: (n, 0, 0)),
            scratch_shapes=[pltpu.VMEM((9 * Cp, Nb * HW), x_nchw.dtype)],
        ),
        compiler_params=pltpu.CompilerParams(
            dimension_semantics=("parallel",),              # megacore / both v7x TCs
            vmem_limit_bytes=vmem_limit_bytes,
        ),
    )(x_flat, w_mat, b2d, masks)

    return out_flat.reshape(N, Cout, H, W)


def _reference_conv(x_nchw, weight, bias):
    """Pure-JAX reference (lax.conv) for a correctness check."""
    out = lax.conv_general_dilated(
        x_nchw, weight,
        window_strides=(1, 1), padding="SAME",
        dimension_numbers=("NCHW", "OIHW", "NCHW"),
    )
    return out + bias.reshape(1, -1, 1, 1)


if __name__ == "__main__":
    key = jax.random.PRNGKey(0)
    k_x, k_w, k_b = jax.random.split(key, 3)

    N, C, H, W = 2, 4, 16, 16

    # Deterministic parameter init (Conv2d(C, C, 3) shapes), torch-default-like.
    fan_in = C * 3 * 3
    bound = 1.0 / (fan_in ** 0.5)
    weight = jax.random.uniform(k_w, (C, C, 3, 3), jnp.float32, -bound, bound)
    bias = jax.random.uniform(k_b, (C,), jnp.float32, -bound, bound)

    x = jax.random.normal(k_x, (N, C, H, W), jnp.float32)

    out = jax.block_until_ready(conv2d_same_3x3(x, weight, bias))

    ref = jax.block_until_ready(_reference_conv(x, weight, bias))
    assert out.shape == (N, C, H, W)
    assert jnp.allclose(out, ref, atol=1e-5, rtol=1e-5), "mismatch vs reference conv"

    print("KERNEL_OK")
</pallas_src>

<mosaic_0001>
module attributes {stable_mosaic.version = 11 : i64} {
  func.func @_conv3x3_same_kernel(%arg0: i32, %arg1: memref<1x8x256xf32, #tpu.memory_space<vmem>>, %arg2: memref<4x72xf32, #tpu.memory_space<vmem>>, %arg3: memref<4x1xf32, #tpu.memory_space<vmem>>, %arg4: memref<9x256xf32, #tpu.memory_space<vmem>>, %arg5: memref<1x4x256xf32, #tpu.memory_space<vmem>>, %arg6: memref<72x256xf32, #tpu.memory_space<vmem>>) attributes {dimension_semantics = [#tpu.dimension_semantics<parallel>], iteration_bounds = array<i64: 2>, scalar_prefetch = 0 : i64, scratch_operands = 1 : i64, tpu.core_type = #tpu.core_type<tc>, window_params = [{transform_indices = @transform_0, window_bounds = array<i64: 1, 8, 256>}, {pipeline_mode = #tpu.pipeline_mode<synchronous>, transform_indices = @transform_1, window_bounds = array<i64: 4, 72>}, {pipeline_mode = #tpu.pipeline_mode<synchronous>, transform_indices = @transform_2, window_bounds = array<i64: 4, 1>}, {pipeline_mode = #tpu.pipeline_mode<synchronous>, transform_indices = @transform_3, window_bounds = array<i64: 9, 256>}, {transform_indices = @transform_4, window_bounds = array<i64: 1, 4, 256>}]} {
    %c0 = arith.constant 0 : index
    %c0_0 = arith.constant 0 : index
    %c0_1 = arith.constant 0 : index
    %0 = vector.load %arg1[%c0, %c0_0, %c0_1] : memref<1x8x256xf32, #tpu.memory_space<vmem>>, vector<1x8x256xf32>
    %1 = vector.shape_cast %0 : vector<1x8x256xf32> to vector<8x256xf32>
    %c17_i32 = arith.constant 17 : i32
    %2 = tpu.dynamic_rotate %1 by %c17_i32 dim 1 : vector<8x256xf32>, i32 -> vector<8x256xf32>
    %c0_2 = arith.constant 0 : index
    %c0_3 = arith.constant 0 : index
    %3 = vector.load %arg4[%c0_2, %c0_3] : memref<9x256xf32, #tpu.memory_space<vmem>>, vector<1x256xf32>
    %4 = vector.broadcast %3 : vector<1x256xf32> to vector<8x256xf32>
    %5 = arith.mulf %2, %4 : vector<8x256xf32>
    %c0_4 = arith.constant 0 : index
    %c0_5 = arith.constant 0 : index
    %6 = vector.load %arg6[%c0_4, %c0_5] : memref<72x256xf32, #tpu.memory_space<vmem>>, vector<8x256xf32>
    tpu.vector_store %arg6[%c0_4, %c0_5], %5 {strides = array<i32>} : memref<72x256xf32, #tpu.memory_space<vmem>>, vector<8x256xf32>,
    %c16_i32 = arith.constant 16 : i32
    %7 = tpu.dynamic_rotate %1 by %c16_i32 dim 1 : vector<8x256xf32>, i32 -> vector<8x256xf32>
    %c1 = arith.constant 1 : index
    %c0_6 = arith.constant 0 : index
    %8 = vector.load %arg4[%c1, %c0_6] : memref<9x256xf32, #tpu.memory_space<vmem>>, vector<1x256xf32>
    %9 = vector.broadcast %8 : vector<1x256xf32> to vector<8x256xf32>
    %10 = arith.mulf %7, %9 : vector<8x256xf32>
    %c8 = arith.constant 8 : index
    %c0_7 = arith.constant 0 : index
    %11 = vector.load %arg6[%c8, %c0_7] : memref<72x256xf32, #tpu.memory_space<vmem>>, vector<8x256xf32>
    tpu.vector_store %arg6[%c8, %c0_7], %10 {strides = array<i32>} : memref<72x256xf32, #tpu.memory_space<vmem>>, vector<8x256xf32>,
    %c15_i32 = arith.constant 15 : i32
    %12 = tpu.dynamic_rotate %1 by %c15_i32 dim 1 : vector<8x256xf32>, i32 -> vector<8x256xf32>
    %c2 = arith.constant 2 : index
    %c0_8 = arith.constant 0 : index
    %13 = vector.load %arg4[%c2, %c0_8] : memref<9x256xf32, #tpu.memory_space<vmem>>, vector<1x256xf32>
    %14 = vector.broadcast %13 : vector<1x256xf32> to vector<8x256xf32>
    %15 = arith.mulf %12, %14 : vector<8x256xf32>
    %c16 = arith.constant 16 : index
    %c0_9 = arith.constant 0 : index
    %16 = vector.load %arg6[%c16, %c0_9] : memref<72x256xf32, #tpu.memory_space<vmem>>, vector<8x256xf32>
    tpu.vector_store %arg6[%c16, %c0_9], %15 {strides = array<i32>} : memref<72x256xf32, #tpu.memory_space<vmem>>, vector<8x256xf32>,
    %c1_i32 = arith.constant 1 : i32
    %17 = tpu.dynamic_rotate %1 by %c1_i32 dim 1 : vector<8x256xf32>, i32 -> vector<8x256xf32>
    %c3 = arith.constant 3 : index
    %c0_10 = arith.constant 0 : index
    %18 = vector.load %arg4[%c3, %c0_10] : memref<9x256xf32, #tpu.memory_space<vmem>>, vector<1x256xf32>
    %19 = vector.broadcast %18 : vector<1x256xf32> to vector<8x256xf32>
    %20 = arith.mulf %17, %19 : vector<8x256xf32>
    %c24 = arith.constant 24 : index
    %c0_11 = arith.constant 0 : index
    %21 = vector.load %arg6[%c24, %c0_11] : memref<72x256xf32, #tpu.memory_space<vmem>>, vector<8x256xf32>
    tpu.vector_store %arg6[%c24, %c0_11], %20 {strides = array<i32>} : memref<72x256xf32, #tpu.memory_space<vmem>>, vector<8x256xf32>,
    %c32 = arith.constant 32 : index
    %c0_12 = arith.constant 0 : index
    %22 = vector.load %arg6[%c32, %c0_12] : memref<72x256xf32, #tpu.memory_space<vmem>>, vector<8x256xf32>
    tpu.vector_store %arg6[%c32, %c0_12], %1 {strides = array<i32>} : memref<72x256xf32, #tpu.memory_space<vmem>>, vector<8x256xf32>,
    %c255_i32 = arith.constant 255 : i32
    %23 = tpu.dynamic_rotate %1 by %c255_i32 dim 1 : vector<8x256xf32>, i32 -> vector<8x256xf32>
    %c5 = arith.constant 5 : index
    %c0_13 = arith.constant 0 : index
    %24 = vector.load %arg4[%c5, %c0_13] : memref<9x256xf32, #tpu.memory_space<vmem>>, vector<1x256xf32>
    %25 = vector.broadcast %24 : vector<1x256xf32> to vector<8x256xf32>
    %26 = arith.mulf %23, %25 : vector<8x256xf32>
    %c40 = arith.constant 40 : index
    %c0_14 = arith.constant 0 : index
    %27 = vector.load %arg6[%c40, %c0_14] : memref<72x256xf32, #tpu.memory_space<vmem>>, vector<8x256xf32>
    tpu.vector_store %arg6[%c40, %c0_14], %26 {strides = array<i32>} : memref<72x256xf32, #tpu.memory_space<vmem>>, vector<8x256xf32>,
    %c241_i32 = arith.constant 241 : i32
    %28 = tpu.dynamic_rotate %1 by %c241_i32 dim 1 : vector<8x256xf32>, i32 -> vector<8x256xf32>
    %c6 = arith.constant 6 : index
    %c0_15 = arith.constant 0 : index
    %29 = vector.load %arg4[%c6, %c0_15] : memref<9x256xf32, #tpu.memory_space<vmem>>, vector<1x256xf32>
    %30 = vector.broadcast %29 : vector<1x256xf32> to vector<8x256xf32>
    %31 = arith.mulf %28, %30 : vector<8x256xf32>
    %c48 = arith.constant 48 : index
    %c0_16 = arith.constant 0 : index
    %32 = vector.load %arg6[%c48, %c0_16] : memref<72x256xf32, #tpu.memory_space<vmem>>, vector<8x256xf32>
    tpu.vector_store %arg6[%c48, %c0_16], %31 {strides = array<i32>} : memref<72x256xf32, #tpu.memory_space<vmem>>, vector<8x256xf32>,
    %c240_i32 = arith.constant 240 : i32
    %33 = tpu.dynamic_rotate %1 by %c240_i32 dim 1 : vector<8x256xf32>, i32 -> vector<8x256xf32>
    %c7 = arith.constant 7 : index
    %c0_17 = arith.constant 0 : index
    %34 = vector.load %arg4[%c7, %c0_17] : memref<9x256xf32, #tpu.memory_space<vmem>>, vector<1x256xf32>
    %35 = vector.broadcast %34 : vector<1x256xf32> to vector<8x256xf32>
    %36 = arith.mulf %33, %35 : vector<8x256xf32>
    %c56 = arith.constant 56 : index
    %c0_18 = arith.constant 0 : index
    %37 = vector.load %arg6[%c56, %c0_18] : memref<72x256xf32, #tpu.memory_space<vmem>>, vector<8x256xf32>
    tpu.vector_store %arg6[%c56, %c0_18], %36 {strides = array<i32>} : memref<72x256xf32, #tpu.memory_space<vmem>>, vector<8x256xf32>,
    %c239_i32 = arith.constant 239 : i32
    %38 = tpu.dynamic_rotate %1 by %c239_i32 dim 1 : vector<8x256xf32>, i32 -> vector<8x256xf32>
    %c8_19 = arith.constant 8 : index
    %c0_20 = arith.constant 0 : index
    %39 = vector.load %arg4[%c8_19, %c0_20] : memref<9x256xf32, #tpu.memory_space<vmem>>, vector<1x256xf32>
    %40 = vector.broadcast %39 : vector<1x256xf32> to vector<8x256xf32>
    %41 = arith.mulf %38, %40 : vector<8x256xf32>
    %c64 = arith.constant 64 : index
    %c0_21 = arith.constant 0 : index
    %42 = vector.load %arg6[%c64, %c0_21] : memref<72x256xf32, #tpu.memory_space<vmem>>, vector<8x256xf32>
    tpu.vector_store %arg6[%c64, %c0_21], %41 {strides = array<i32>} : memref<72x256xf32, #tpu.memory_space<vmem>>, vector<8x256xf32>,
    %c0_22 = arith.constant 0 : index
    %c0_23 = arith.constant 0 : index
    %43 = vector.load %arg2[%c0_22, %c0_23] : memref<4x72xf32, #tpu.memory_space<vmem>>, vector<4x72xf32>
    %c0_24 = arith.constant 0 : index
    %c0_25 = arith.constant 0 : index
    %44 = vector.load %arg6[%c0_24, %c0_25] : memref<72x256xf32, #tpu.memory_space<vmem>>, vector<72x256xf32>
    %cst = arith.constant dense<0.000000e+00> : vector<4x256xf32>
    %45 = tpu.matmul %43, %44, %cst {dimension_numbers = #tpu.dot_dimension_numbers<[1], [0], [0], [1], [0, 0, 1, 1], [], []>} : vector<4x72xf32>, vector<72x256xf32>, vector<4x256xf32> -> vector<4x256xf32>
    %c0_26 = arith.constant 0 : index
    %c0_27 = arith.constant 0 : index
    %46 = vector.load %arg3[%c0_26, %c0_27] : memref<4x1xf32, #tpu.memory_space<vmem>>, vector<4x1xf32>
    %47 = vector.broadcast %46 : vector<4x1xf32> to vector<4x256xf32>
    %48 = arith.addf %45, %47 : vector<4x256xf32>
    %c0_28 = arith.constant 0 : index
    %c0_29 = arith.constant 0 : index
    %c0_30 = arith.constant 0 : index
    %49 = vector.load %arg5[%c0_28, %c0_29, %c0_30] : memref<1x4x256xf32, #tpu.memory_space<vmem>>, vector<1x4x256xf32>
    %50 = vector.shape_cast %49 : vector<1x4x256xf32> to vector<4x256xf32>
    %51 = vector.shape_cast %48 : vector<4x256xf32> to vector<1x4x256xf32>
    tpu.vector_store %arg5[%c0_28, %c0_29, %c0_30], %51 {strides = array<i32>} : memref<1x4x256xf32, #tpu.memory_space<vmem>>, vector<1x4x256xf32>,
    return
  }
  func.func @transform_0(%arg0: i32) -> (i32, i32, i32) {
    %c0_i32 = arith.constant 0 : i32
    %c0_i32_0 = arith.constant 0 : i32
    %c0_i32_1 = arith.constant 0 : i32
    return %arg0, %c0_i32, %c0_i32_0 : i32, i32, i32
  }
  func.func @transform_1(%arg0: i32) -> (i32, i32) {
    %c0_i32 = arith.constant 0 : i32
    %c0_i32_0 = arith.constant 0 : i32
    %c0_i32_1 = arith.constant 0 : i32
    return %c0_i32, %c0_i32_0 : i32, i32
  }
  func.func @transform_2(%arg0: i32) -> (i32, i32) {
    %c0_i32 = arith.constant 0 : i32
    %c0_i32_0 = arith.constant 0 : i32
    %c0_i32_1 = arith.constant 0 : i32
    return %c0_i32, %c0_i32_0 : i32, i32
  }
  func.func @transform_3(%arg0: i32) -> (i32, i32) {
    %c0_i32 = arith.constant 0 : i32
    %c0_i32_0 = arith.constant 0 : i32
    %c0_i32_1 = arith.constant 0 : i32
    return %c0_i32, %c0_i32_0 : i32, i32
  }
  func.func @transform_4(%arg0: i32) -> (i32, i32, i32) {
    %c0_i32 = arith.constant 0 : i32
    %c0_i32_0 = arith.constant 0 : i32
    %c0_i32_1 = arith.constant 0 : i32
    return %arg0, %c0_i32, %c0_i32_0 : i32, i32, i32
  }
}

</mosaic_0001>

<llo_original>
// kernel: tpu_custom_call.1
$region0: #{tpu_custom_call.1}
  #allocation0 [shape = 'u32[]', space=smem, size = 0x4, offset = 0x4, fixed_abs, tag = 'smem constant byte address 0x4 - core index']
  #allocation1 [shape = 'u32[144,128]{1,0:T(1,128)}', space=vmem, size = 0x12000, scoped, tag = 'internal scratch']
  #allocation2 [shape = 'f32[72,256]{1,0:T(8,128)}', space=vmem, size = 0x12000, scoped, tag = 'scratch operand']
  %s0 = inlined_call_operand.hbm [shape: f32[2,8,256], index: 0, kind: input, shape index: {}]
  %s1 = inlined_call_operand.vmem [shape: f32[4,72], index: 1, kind: input, shape index: {}]
  %s2 = inlined_call_operand.vmem [shape: f32[4,1], index: 2, kind: input, shape index: {}]
  %s3 = inlined_call_operand.hbm [shape: f32[9,256], index: 3, kind: input, shape index: {}]
  %s4 = inlined_call_operand.hbm [shape: f32[2,4,256], index: 4, kind: output, shape index: {}]
  %s5 = sld [smem:[#allocation0]]
  $region57: #{tpu_custom_call.1} parent=0
    _
  %s7 = ssub.s32 1, %s5
  %s8 = scalar_select 0, %s7, %s5
  $region1: #{tpu_custom_call.1} parent=0
    #allocation3 [shape = 'u8[16384]{0}', space=vmem, size = 0x4000, scoped, tag = 'input window, operand 0']
    #allocation4 [shape = 's32[2]{0}', space=sflag, size = 0x8, scoped, tag = 'scoped memory for tpu_custom_call.1']
    #allocation5 [shape = 's32[2]{0}', space=sflag, size = 0x8, scoped, tag = 'scoped memory for tpu_custom_call.1']
    #allocation6 [shape = 'u8[16384]{0}', space=vmem, size = 0x4000, scoped, tag = 'input window, operand 3, single buffered']
    #allocation7 [shape = 's32[1]{0}', space=sflag, size = 0x4, scoped, tag = 'scoped memory for tpu_custom_call.1']
    #allocation8 [shape = 'u8[8192]{0}', space=vmem, size = 0x2000, scoped, tag = 'output window, operand 0']
    %9 = vsyncpa [#allocation4], 0
    %s10 = scalar_lea.sflag [#allocation4], 1
    %11 = vsyncpa %s10, 0
    %12 = vsyncpa [#allocation7], 0
    %13 = vsyncpa [#allocation5], 0
    %s14 = scalar_lea.sflag [#allocation5], 1
    %15 = vsyncpa %s14, 0
    loop: start=0, step=1, limit=4
    $region2: #{tpu_custom_call.1} parent=1 // loop_pre_header
      _
    $region3: #{tpu_custom_call.1} parent=1 // loop_header
      %s17 = sphi 0, %s21
      %p18 = scmp.ge.s32.totalorder %s17, 4
      %s27 = sphi 0, %s29
      %s30 = sphi 0, %s27
      %s31 = sphi 0, %s30
      %s47 = sphi 0, %s31
      %s51 = sphi 0, %s51
      %s53 = sphi 0, %s51
      %s54 = sphi 0, %s53
      %s68 = sphi 0, %s54
      %s72 = sphi 0, %s72
      %s74 = sphi 0, %s72
      %s75 = sphi 0, %s74
      %s89 = sphi 0, %s75
      %s93 = sphi 0, %s93
      %s95 = sphi 0, %s93
      %s96 = sphi 0, %s95
      %s110 = sphi 0, %s96
      %s116 = sphi 0, %s118
      %s119 = sphi 0, %s116
      %s120 = sphi 0, %s119
      %s136 = sphi 0, %s120
    $region4: #{tpu_custom_call.1} parent=1 // loop_header_branch
      %20 = sbr.rel (%p18) target = $region8
    $region5: #{tpu_custom_call.1} parent=1 // loop_body
      %s22 = ssub.s32 %s17, 1
      %s23 = ssub.s32 %s17, 2
      %s24 = sadd.s32 %s17, 1
      %s25 = ssub.s32 %s17, %s24
      %p26 = scmp.eq.s32.totalorder %s25, 0
      %s28 = sadd.s32 %s27, 1
      %s29 = scalar_select %p26, %s27, %s28
      %p32 = pneg %p26
      %p33 = scmp.eq.s32.totalorder %s17, 1
      %p34 = por %p32, %p33
      %p35 = scmp.ne.s32.totalorder %s27, %s30
      %p36 = scmp.eq.s32.totalorder %s17, 0
      %p37 = por %p35, %p36
      %p38 = scmp.ne.s32.totalorder %s27, %s30
      %p39 = scmp.eq.s32.totalorder %s22, 1
      %p40 = por %p38, %p39
      %p41 = scmp.ne.s32.totalorder %s30, %s31
      %p42 = scmp.eq.s32.totalorder %s22, 0
      %p43 = por %p41, %p42
      %p44 = scmp.ne.s32.totalorder %s30, %s31
      %p45 = scmp.eq.s32.totalorder %s23, 1
      %p46 = por %p44, %p45
      %p48 = scmp.ne.s32.totalorder %s31, %s47
      %p49 = scmp.eq.s32.totalorder %s23, 0
      %p50 = por %p48, %p49
      %s52 = sadd.s32 %s51, 1
      %p55 = scmp.eq.s32.totalorder %s17, 1
      %p56 = scmp.ne.s32.totalorder %s51, %s53
      %p57 = scmp.eq.s32.totalorder %s17, 0
      %p58 = por %p56, %p57
      %p59 = scmp.ne.s32.totalorder %s51, %s53
      %p60 = scmp.eq.s32.totalorder %s22, 1
      %p61 = por %p59, %p60
      %p62 = scmp.ne.s32.totalorder %s53, %s54
      %p63 = scmp.eq.s32.totalorder %s22, 0
      %p64 = por %p62, %p63
      %p65 = scmp.ne.s32.totalorder %s53, %s54
      %p66 = scmp.eq.s32.totalorder %s23, 1
      %p67 = por %p65, %p66
      %p69 = scmp.ne.s32.totalorder %s54, %s68
      %p70 = scmp.eq.s32.totalorder %s23, 0
      %p71 = por %p69, %p70
      %s73 = sadd.s32 %s72, 1
      %p76 = scmp.eq.s32.totalorder %s17, 1
      %p77 = scmp.ne.s32.totalorder %s72, %s74
      %p78 = scmp.eq.s32.totalorder %s17, 0
      %p79 = por %p77, %p78
      %p80 = scmp.ne.s32.totalorder %s72, %s74
      %p81 = scmp.eq.s32.totalorder %s22, 1
      %p82 = por %p80, %p81
      %p83 = scmp.ne.s32.totalorder %s74, %s75
      %p84 = scmp.eq.s32.totalorder %s22, 0
      %p85 = por %p83, %p84
      %p86 = scmp.ne.s32.totalorder %s74, %s75
      %p87 = scmp.eq.s32.totalorder %s23, 1
      %p88 = por %p86, %p87
      %p90 = scmp.ne.s32.totalorder %s75, %s89
      %p91 = scmp.eq.s32.totalorder %s23, 0
      %p92 = por %p90, %p91
      %s94 = sadd.s32 %s93, 1
      %p97 = scmp.eq.s32.totalorder %s17, 1
      %p98 = scmp.ne.s32.totalorder %s93, %s95
      %p99 = scmp.eq.s32.totalorder %s17, 0
      %p100 = por %p98, %p99
      %p101 = scmp.ne.s32.totalorder %s93, %s95
      %p102 = scmp.eq.s32.totalorder %s22, 1
      %p103 = por %p101, %p102
      %p104 = scmp.ne.s32.totalorder %s95, %s96
      %p105 = scmp.eq.s32.totalorder %s22, 0
      %p106 = por %p104, %p105
      %p107 = scmp.ne.s32.totalorder %s95, %s96
      %p108 = scmp.eq.s32.totalorder %s23, 1
      %p109 = por %p107, %p108
      %p111 = scmp.ne.s32.totalorder %s96, %s110
      %p112 = scmp.eq.s32.totalorder %s23, 0
      %p113 = por %p111, %p112
      %s114 = ssub.s32 %s17, %s24
      %p115 = scmp.eq.s32.totalorder %s114, 0
      %s117 = sadd.s32 %s116, 1
      %s118 = scalar_select %p115, %s116, %s117
      %p121 = pneg %p115
      %p122 = scmp.eq.s32.totalorder %s17, 1
      %p123 = por %p121, %p122
      %p124 = scmp.ne.s32.totalorder %s116, %s119
      %p125 = scmp.eq.s32.totalorder %s17, 0
      %p126 = por %p124, %p125
      %p127 = scmp.ne.s32.totalorder %s116, %s119
      %p128 = scmp.eq.s32.totalorder %s22, 1
      %p129 = por %p127, %p128
      %p130 = scmp.ne.s32.totalorder %s119, %s120
      %p131 = scmp.eq.s32.totalorder %s22, 0
      %p132 = por %p130, %p131
      %p133 = scmp.ne.s32.totalorder %s119, %s120
      %p134 = scmp.eq.s32.totalorder %s23, 1
      %p135 = por %p133, %p134
      %p137 = scmp.ne.s32.totalorder %s120, %s136
      %p138 = scmp.eq.s32.totalorder %s23, 0
      %p139 = por %p137, %p138
      %p140 = scmp.le.s32.totalorder 1, %s17
      %p141 = scmp.lt.s32.totalorder %s17, 3
      %p142 = pnand %p140, %p141
      %p143 = pneg %p142
      // Predicated region
      $region9: #{tpu_custom_call.1} parent=5 // pred_check
        _
      $region10: #{tpu_custom_call.1} parent=5 // pred_check_branch
        %145 = sbr.rel (%p142) target = $region12
      $region11: #{tpu_custom_call.1} parent=5 // pred_region
        %s146 = ssub.s32 %s17, 1
        // Predicated region
        $region13: #{tpu_custom_call.1} parent=11 // pred_check
          %p147 = pneg %p64
        $region14: #{tpu_custom_call.1} parent=11 // pred_check_branch
          %149 = sbr.rel (%p147) target = $region16
        $region15: #{tpu_custom_call.1} parent=11 // pred_region
          _
        $region16: #{tpu_custom_call.1} parent=11 // pred_fallthru
          _
        // Predicated region
        $region17: #{tpu_custom_call.1} parent=11 // pred_check
          %p150 = pneg %p85
        $region18: #{tpu_custom_call.1} parent=11 // pred_check_branch
          %152 = sbr.rel (%p150) target = $region20
        $region19: #{tpu_custom_call.1} parent=11 // pred_region
          _
        $region20: #{tpu_custom_call.1} parent=11 // pred_fallthru
          _
        // Predicated region
        $region21: #{tpu_custom_call.1} parent=11 // pred_check
          %p153 = pneg %p106
        $region22: #{tpu_custom_call.1} parent=11 // pred_check_branch
          %155 = sbr.rel (%p153) target = $region24
        $region23: #{tpu_custom_call.1} parent=11 // pred_region
          %s157 = ssub.s32 512, 512
          %158 = vsyncadd [#allocation7], %s157
          %s159 = sshll.u32 [#allocation6], 4
          %s160 = int_to_ptr.vmem [resolvable:$true] %s159
          %165 = dma.hbm_to_vmem [thread:$0]  %s3, 512, %s160, [#allocation7], 256, 256, 16
        $region24: #{tpu_custom_call.1} parent=11 // pred_fallthru
          _
      $region12: #{tpu_custom_call.1} parent=5 // pred_fallthru
        _
      %p166 = scmp.lt.s32.totalorder %s17, 2
      // Predicated region
      $region25: #{tpu_custom_call.1} parent=5 // pred_check
        %p167 = pneg %p166
      $region26: #{tpu_custom_call.1} parent=5 // pred_check_branch
        %169 = sbr.rel (%p167) target = $region28
      $region27: #{tpu_custom_call.1} parent=5 // pred_region
        // Predicated region
        $region29: #{tpu_custom_call.1} parent=27 // pred_check
          %p170 = pneg %p37
        $region30: #{tpu_custom_call.1} parent=27 // pred_check_branch
          %172 = sbr.rel (%p170) target = $region32
        $region31: #{tpu_custom_call.1} parent=27 // pred_region
          %s173 = sand.u32 %s27, 1
          %s174 = scalar_lea.sflag [#allocation4], %s173
          %s175 = sand.u32 %s27, 1
          %s176 = smul.addr %s175, 16
          %s177 = scalar_lea.vmem [#allocation3], %s176
          %s179 = ssub.s32 256, 256
          %180 = vsyncadd %s174, %s179
          %s181 = smul.addr %s17, 2
          %s182 = smul.addr %s181, 128
          %s183 = scalar_lea.hbm %s0, %s182
          %s185 = sshll.u32 %s177, 4
          %s186 = int_to_ptr.vmem [resolvable:$true] %s185
          %188 = dma.hbm_to_vmem [thread:$0]  %s183, 256, %s186, %s174
        $region32: #{tpu_custom_call.1} parent=27 // pred_fallthru
          _
      $region28: #{tpu_custom_call.1} parent=5 // pred_fallthru
        _
      %p189 = scmp.le.s32.totalorder 1, %s17
      %p190 = scmp.lt.s32.totalorder %s17, 3
      %p191 = pnand %p189, %p190
      %p192 = pneg %p191
      // Predicated region
      $region33: #{tpu_custom_call.1} parent=5 // pred_check
        _
      $region34: #{tpu_custom_call.1} parent=5 // pred_check_branch
        %194 = sbr.rel (%p191) target = $region36
      $region35: #{tpu_custom_call.1} parent=5 // pred_region
        %s195 = ssub.s32 %s17, 1
        %s196 = sand.u32 %s30, 1
        %s197 = scalar_lea.sflag [#allocation4], %s196
        %s198 = sand.u32 %s30, 1
        %s199 = smul.addr %s198, 16
        %s200 = scalar_lea.vmem [#allocation3], %s199
        // Predicated region
        $region37: #{tpu_custom_call.1} parent=35 // pred_check
          %p201 = pneg %p43
        $region38: #{tpu_custom_call.1} parent=35 // pred_check_branch
          %203 = sbr.rel (%p201) target = $region40
        $region39: #{tpu_custom_call.1} parent=35 // pred_region
          %204 = dma.done %s197, 256
        $region40: #{tpu_custom_call.1} parent=35 // pred_fallthru
          _
        // Predicated region
        $region41: #{tpu_custom_call.1} parent=35 // pred_check
          %p205 = pneg %p106
        $region42: #{tpu_custom_call.1} parent=35 // pred_check_branch
          %207 = sbr.rel (%p205) target = $region44
        $region43: #{tpu_custom_call.1} parent=35 // pred_region
          %208 = dma.done [#allocation7], 512
        $region44: #{tpu_custom_call.1} parent=35 // pred_fallthru
          _
        %s209 = sand.u32 %s30, 1
        %s210 = scalar_lea.sflag [#allocation4], %s209
        %s211 = sand.u32 %s30, 1
        %s212 = smul.addr %s211, 16
        %s213 = scalar_lea.vmem [#allocation3], %s212
        %p214 = pneg %p43
        %p215 = pneg %p40
        %p216 = pneg %p64
        %p217 = pneg %p61
        %p218 = pneg %p85
        %p219 = pneg %p82
        %p220 = pneg %p106
        %p221 = pneg %p103
        %p222 = pneg %p132
        %p223 = pneg %p129
        %s224 = sand.u32 %s119, 1
        %s225 = scalar_lea.sflag [#allocation5], %s224
        %s226 = sand.u32 %s119, 1
        %s227 = smul.addr %s226, 8
        %s228 = scalar_lea.vmem [#allocation8], %s227
        %v229 = vld [vmem:[%s200] sm:$0xff]
        %v230 = vld [vmem:[%s200 + $0x8] sm:$0xff]
        %231 = vrot.lane.b32.xlu0 %v229, 17
        %v232 = vpop.permute.xlu0 %231
        %233 = vrot.lane.b32.xlu0 %v230, 17
        %v234 = vpop.permute.xlu0 %233
        %v235 = vlaneseq
        %v236 = vand.u32 %v235, 127
        %vm237 = vcmp.lt.s32.totalorder %v236, 17
        %v238 = vsel %vm237, %v232, %v234
        %v239 = vsel %vm237, %v234, %v232
        %v240 = vld [vmem:[#allocation6] ss:$8 sm:$0x3]
        %v242 = vlaneseq
        %v243 = vshrl.u32 %v242, 7
        %v244 = vsub.s32 0, %v243
        %v245 = vrot.slane %v240, %v244
        %v246 = vlaneseq
        %v247 = vshrl.u32 %v246, 7
        %v248 = vsub.s32 1, %v247
        %v249 = vrot.slane %v240, %v248
        %v252 = vmul.f32 %v239, %v245
        %v253 = vmul.f32 %v238, %v249
        %254 = vst [vmem:[#allocation2] sm:$0xff] %v252
        %255 = vst [vmem:[#allocation2 + $0x8] sm:$0xff] %v253
        %256 = vrot.lane.b32.xlu0 %v229, 16
        %v257 = vpop.permute.xlu0 %256
        %258 = vrot.lane.b32.xlu0 %v230, 16
        %v259 = vpop.permute.xlu0 %258
        %vm260 = vcmp.lt.s32.totalorder %v236, 16
        %v261 = vsel %vm260, %v257, %v259
        %v262 = vsel %vm260, %v259, %v257
        %s263 = scalar_lea.vmem [#allocation6], 1
        %v264 = vld [vmem:[%s263] ss:$8 sm:$0x3]
        %v266 = vlaneseq
        %v267 = vshrl.u32 %v266, 7
        %v268 = vsub.s32 0, %v267
        %v269 = vrot.slane %v264, %v268
        %v270 = vlaneseq
        %v271 = vshrl.u32 %v270, 7
        %v272 = vsub.s32 1, %v271
        %v273 = vrot.slane %v264, %v272
        %v276 = vmul.f32 %v262, %v269
        %v277 = vmul.f32 %v261, %v273
        %278 = vst [vmem:[#allocation2 + $0x10] sm:$0xff] %v276
        %279 = vst [vmem:[#allocation2 + $0x18] sm:$0xff] %v277
        %280 = vrot.lane.b32.xlu0 %v229, 15
        %v281 = vpop.permute.xlu0 %280
        %282 = vrot.lane.b32.xlu0 %v230, 15
        %v283 = vpop.permute.xlu0 %282
        %vm284 = vcmp.lt.s32.totalorder %v236, 15
        %v285 = vsel %vm284, %v281, %v283
        %v286 = vsel %vm284, %v283, %v281
        %s287 = scalar_lea.vmem [#allocation6], 2
        %v288 = vld [vmem:[%s287] ss:$8 sm:$0x3]
        %v290 = vlaneseq
        %v291 = vshrl.u32 %v290, 7
        %v292 = vsub.s32 0, %v291
        %v293 = vrot.slane %v288, %v292
        %v294 = vlaneseq
        %v295 = vshrl.u32 %v294, 7
        %v296 = vsub.s32 1, %v295
        %v297 = vrot.slane %v288, %v296
        %v300 = vmul.f32 %v286, %v293
        %v301 = vmul.f32 %v285, %v297
        %302 = vst [vmem:[#allocation2 + $0x20] sm:$0xff] %v300
        %303 = vst [vmem:[#allocation2 + $0x28] sm:$0xff] %v301
        %304 = vrot.lane.b32.xlu0 %v229, 1
        %v305 = vpop.permute.xlu0 %304
        %306 = vrot.lane.b32.xlu0 %v230, 1
        %v307 = vpop.permute.xlu0 %306
        %vm308 = vcmp.lt.s32.totalorder %v236, 1
        %v309 = vsel %vm308, %v305, %v307
        %v310 = vsel %vm308, %v307, %v305
        %s311 = scalar_lea.vmem [#allocation6], 3
        %v312 = vld [vmem:[%s311] ss:$8 sm:$0x3]
        %v314 = vlaneseq
        %v315 = vshrl.u32 %v314, 7
        %v316 = vsub.s32 0, %v315
        %v317 = vrot.slane %v312, %v316
        %v318 = vlaneseq
        %v319 = vshrl.u32 %v318, 7
        %v320 = vsub.s32 1, %v319
        %v321 = vrot.slane %v312, %v320
        %v324 = vmul.f32 %v310, %v317
        %v325 = vmul.f32 %v309, %v321
        %326 = vst [vmem:[#allocation2 + $0x30] sm:$0xff] %v324
        %327 = vst [vmem:[#allocation2 + $0x38] sm:$0xff] %v325
        %328 = vst [vmem:[#allocation2 + $0x40] sm:$0xff] %v229
        %329 = vst [vmem:[#allocation2 + $0x48] sm:$0xff] %v230
        %330 = vrot.lane.b32.xlu0 %v229, 127
        %v331 = vpop.permute.xlu0 %330
        %332 = vrot.lane.b32.xlu0 %v230, 127
        %v333 = vpop.permute.xlu0 %332
        %vm334 = vcmp.lt.s32.totalorder %v236, 127
        %v335 = vsel %vm334, %v331, %v333
        %v336 = vsel %vm334, %v333, %v331
        %s337 = scalar_lea.vmem [#allocation6], 5
        %v338 = vld [vmem:[%s337] ss:$8 sm:$0x3]
        %v340 = vlaneseq
        %v341 = vshrl.u32 %v340, 7
        %v342 = vsub.s32 0, %v341
        %v343 = vrot.slane %v338, %v342
        %v344 = vlaneseq
        %v345 = vshrl.u32 %v344, 7
        %v346 = vsub.s32 1, %v345
        %v347 = vrot.slane %v338, %v346
        %v350 = vmul.f32 %v335, %v343
        %v351 = vmul.f32 %v336, %v347
        %352 = vst [vmem:[#allocation2 + $0x50] sm:$0xff] %v350
        %353 = vst [vmem:[#allocation2 + $0x58] sm:$0xff] %v351
        %354 = vrot.lane.b32.xlu0 %v229, 113
        %v355 = vpop.permute.xlu0 %354
        %356 = vrot.lane.b32.xlu0 %v230, 113
        %v357 = vpop.permute.xlu0 %356
        %vm358 = vcmp.lt.s32.totalorder %v236, 113
        %v359 = vsel %vm358, %v355, %v357
        %v360 = vsel %vm358, %v357, %v355
        %s361 = scalar_lea.vmem [#allocation6], 6
        %v362 = vld [vmem:[%s361] ss:$8 sm:$0x3]
        %v364 = vlaneseq
        %v365 = vshrl.u32 %v364, 7
        %v366 = vsub.s32 0, %v365
        %v367 = vrot.slane %v362, %v366
        %v368 = vlaneseq
        %v369 = vshrl.u32 %v368, 7
        %v370 = vsub.s32 1, %v369
        %v371 = vrot.slane %v362, %v370
        %v374 = vmul.f32 %v359, %v367
        %v375 = vmul.f32 %v360, %v371
        %376 = vst [vmem:[#allocation2 + $0x60] sm:$0xff] %v374
        %377 = vst [vmem:[#allocation2 + $0x68] sm:$0xff] %v375
        %378 = vrot.lane.b32.xlu0 %v229, 112
        %v379 = vpop.permute.xlu0 %378
        %380 = vrot.lane.b32.xlu0 %v230, 112
        %v381 = vpop.permute.xlu0 %380
        %vm382 = vcmp.lt.s32.totalorder %v236, 112
        %v383 = vsel %vm382, %v379, %v381
        %v384 = vsel %vm382, %v381, %v379
        %s385 = scalar_lea.vmem [#allocation6], 7
        %v386 = vld [vmem:[%s385] ss:$8 sm:$0x3]
        %v388 = vlaneseq
        %v389 = vshrl.u32 %v388, 7
        %v390 = vsub.s32 0, %v389
        %v391 = vrot.slane %v386, %v390
        %v392 = vlaneseq
        %v393 = vshrl.u32 %v392, 7
        %v394 = vsub.s32 1, %v393
        %v395 = vrot.slane %v386, %v394
        %v398 = vmul.f32 %v383, %v391
        %v399 = vmul.f32 %v384, %v395
        %400 = vst [vmem:[#allocation2 + $0x70] sm:$0xff] %v398
        %401 = vst [vmem:[#allocation2 + $0x78] sm:$0xff] %v399
        %402 = vrot.lane.b32.xlu0 %v229, 111
        %v403 = vpop.permute.xlu0 %402
        %404 = vrot.lane.b32.xlu0 %v230, 111
        %v405 = vpop.permute.xlu0 %404
        %vm406 = vcmp.lt.s32.totalorder %v236, 111
        %v407 = vsel %vm406, %v403, %v405
        %v408 = vsel %vm406, %v405, %v403
        %s409 = scalar_lea.vmem [#allocation6], 16
        %v410 = vld [vmem:[%s409] ss:$8 sm:$0x3]
        %v412 = vlaneseq
        %v413 = vshrl.u32 %v412, 7
        %v414 = vsub.s32 0, %v413
        %v415 = vrot.slane %v410, %v414
        %v416 = vlaneseq
        %v417 = vshrl.u32 %v416, 7
        %v418 = vsub.s32 1, %v417
        %v419 = vrot.slane %v410, %v418
        %v422 = vmul.f32 %v407, %v415
        %v423 = vmul.f32 %v408, %v419
        %424 = vst [vmem:[#allocation2 + $0x80] sm:$0xff] %v422
        %425 = vst [vmem:[#allocation2 + $0x88] sm:$0xff] %v423
        %v426 = vld [vmem:[%s1] sm:$0xf]
        %v427 = vld [vmem:[#allocation2] sm:$0xff]
        %v428 = vld [vmem:[#allocation2 + $0x8] sm:$0xff]
        %v429 = vld [vmem:[#allocation2 + $0x10] sm:$0xff]
        %v430 = vld [vmem:[#allocation2 + $0x18] sm:$0xff]
        %v431 = vld [vmem:[#allocation2 + $0x20] sm:$0xff]
        %v432 = vld [vmem:[#allocation2 + $0x28] sm:$0xff]
        %v433 = vld [vmem:[#allocation2 + $0x30] sm:$0xff]
        %v434 = vld [vmem:[#allocation2 + $0x38] sm:$0xff]
        %v435 = vld [vmem:[#allocation2 + $0x40] sm:$0xff]
        %v436 = vld [vmem:[#allocation2 + $0x48] sm:$0xff]
        %v437 = vld [vmem:[#allocation2 + $0x50] sm:$0xff]
        %v438 = vld [vmem:[#allocation2 + $0x58] sm:$0xff]
        %v439 = vld [vmem:[#allocation2 + $0x60] sm:$0xff]
        %v440 = vld [vmem:[#allocation2 + $0x68] sm:$0xff]
        %v441 = vld [vmem:[#allocation2 + $0x70] sm:$0xff]
        %v442 = vld [vmem:[#allocation2 + $0x78] sm:$0xff]
        %v443 = vld [vmem:[#allocation2 + $0x80] sm:$0xff]
        %v444 = vld [vmem:[#allocation2 + $0x88] sm:$0xff]
        %v445 = vld [vmem:[%s2] sm:$0xf]
        %447 = vset.pattern.permute.xlu0 0
        %448 = vperm.xlu0 %447, %v445
        %v449 = vpop.permute.xlu0 %448
        %vm451 = vcmask 588800
        %v453 = vsel %vm451, %v426, 0
        %455 = vmatprep.subr.mxu0 %v428
        %456 = vmatpush1.msra.mxu0 %v427
        %457 = vmatprep.subr.mxu0 %v430
        %458 = vmatpush1.msra.mxu0 %v429
        %459 = vmatprep.subr.mxu0 %v432
        %460 = vmatpush1.msra.mxu0 %v431
        %461 = vmatprep.subr.mxu0 %v434
        %462 = vmatpush1.msra.mxu0 %v433
        %463 = vmatprep.subr.mxu0 %v436
        %464 = vmatpush1.msra.mxu0 %v435
        %465 = vmatprep.subr.mxu0 %v438
        %466 = vmatpush1.msra.mxu0 %v437
        %467 = vmatprep.subr.mxu0 %v440
        %468 = vmatpush1.msra.mxu0 %v439
        %469 = vmatprep.subr.mxu0 %v442
        %470 = vmatpush1.msra.mxu0 %v441
        %471 = vmatprep.subr.mxu0 %v444
        %472 = vmatpush1.msra.mxu0 %v443
        %473 = vmatprep.subr.mxu0 0.0
        %474 = vmatpush1.msra.mxu0 0.0
        %475 = vmatprep.subr.mxu0 0.0
        %476 = vmatpush1.msra.mxu0 0.0
        %477 = vmatprep.subr.mxu0 0.0
        %478 = vmatpush1.msra.mxu0 0.0
        %479 = vmatprep.subr.mxu0 0.0
        %480 = vmatpush1.msra.mxu0 0.0
        %481 = vmatprep.subr.mxu0 0.0
        %482 = vmatpush1.msra.mxu0 0.0
        %483 = vmatprep.subr.mxu0 0.0
        %484 = vmatpush1.msra.mxu0 0.0
        %485 = vmatprep.subr.mxu0 0.0
        %486 = vmatpush1.msra.mxu0 0.0
        %487 = vmatprep.subr.mxu0 0.0
        %488 = vmatpush1.msra.mxu0 0.0
        %489 = vmatprep.subr.mxu0 0.0
        %490 = vmatpush1.msra.mxu0 0.0
        %491 = vmatprep.subr.mxu0 0.0
        %492 = vmatpush1.msra.mxu0 0.0
        %493 = vmatprep.subr.mxu0 0.0
        %494 = vmatpush1.msra.mxu0 0.0
        %495 = vmatprep.subr.mxu0 0.0
        %496 = vmatpush1.msra.mxu0 0.0
        %497 = vmatprep.subr.mxu0 0.0
        %498 = vmatpush1.msra.mxu0 0.0
        %499 = vmatprep.subr.mxu0 0.0
        %500 = vmatpush1.msra.mxu0 0.0
        %501 = vmatprep.subr.mxu0 0.0
        %502 = vmatpush1.msra.mxu0 0.0
        %503 = vmatprep.subr.mxu0 0.0
        %504 = vmatpush1.msra.mxu0 0.0
        %505 = vmatprep.subr.mxu0 0.0
        %506 = vmatpush1.msra.mxu0 0.0
        %507 = vmatprep.subr.mxu0 0.0
        %508 = vmatpush1.msra.mxu0 0.0
        %509 = vmatprep.subr.mxu0 0.0
        %510 = vmatpush1.msra.mxu0 0.0
        %511 = vmatprep.subr.mxu0 0.0
        %512 = vmatpush1.msra.mxu0 0.0
        %513 = vmatprep.subr.mxu0 0.0
        %514 = vmatpush1.msra.mxu0 0.0
        %515 = vmatprep.subr.mxu0 0.0
        %516 = vmatpush1.msra.mxu0 0.0
        %517 = vmatprep.subr.mxu0 0.0
        %518 = vmatpush1.msra.mxu0 0.0
        %519 = vmatprep.mubr.f32.mxu0 0.0
        %520 = vmatmul.mubr.f32.gmra.mrb[0].mxu0 %v453
        %v521 = vpop.f32.mrb[0].mxu0
        %v522 = vadd.f32 %v449, %v521
        %v523 = vpop.f32.mrb[0].mxu0
        %v524 = vadd.f32 %v449, %v523
        %525 = vdwg.mxu0
        %v528 = vcombine.low %v522, %v524
        %530 = vst [vmem:[%s228] sm:$0xff] %v528
        %s531 = sand.u32 %s119, 1
        %s532 = scalar_lea.sflag [#allocation5], %s531
        %s533 = sand.u32 %s119, 1
        %s534 = smul.addr %s533, 8
        %s535 = scalar_lea.vmem [#allocation8], %s534
        // Predicated region
        $region45: #{tpu_custom_call.1} parent=35 // pred_check
          %p536 = pneg %p129
        $region46: #{tpu_custom_call.1} parent=35 // pred_check_branch
          %538 = sbr.rel (%p536) target = $region48
        $region47: #{tpu_custom_call.1} parent=35 // pred_region
          %s540 = ssub.s32 128, 128
          %541 = vsyncadd %s532, %s540
          %s542 = smul.addr %s22, 2
          %s543 = smul.addr %s542, 64
          %s544 = scalar_lea.hbm %s4, %s543
          %s546 = sshll.u32 %s535, 4
          %s547 = int_to_ptr.vmem [resolvable:$true] %s546
          %549 = dma.vmem_to_hbm [thread:$0]  %s547, 128, %s544, %s532
        $region48: #{tpu_custom_call.1} parent=35 // pred_fallthru
          _
      $region36: #{tpu_custom_call.1} parent=5 // pred_fallthru
        _
      %p550 = scmp.le.s32.totalorder 2, %s17
      // Predicated region
      $region49: #{tpu_custom_call.1} parent=5 // pred_check
        %p551 = pneg %p550
      $region50: #{tpu_custom_call.1} parent=5 // pred_check_branch
        %553 = sbr.rel (%p551) target = $region52
      $region51: #{tpu_custom_call.1} parent=5 // pred_region
        %s554 = ssub.s32 %s17, 2
        // Predicated region
        $region53: #{tpu_custom_call.1} parent=51 // pred_check
          %p555 = pneg %p135
        $region54: #{tpu_custom_call.1} parent=51 // pred_check_branch
          %557 = sbr.rel (%p555) target = $region56
        $region55: #{tpu_custom_call.1} parent=51 // pred_region
          %s558 = sand.u32 %s120, 1
          %s559 = scalar_lea.sflag [#allocation5], %s558
          %s560 = sand.u32 %s120, 1
          %s561 = smul.addr %s560, 8
          %s562 = scalar_lea.vmem [#allocation8], %s561
          %563 = dma.done %s559, 128
        $region56: #{tpu_custom_call.1} parent=51 // pred_fallthru
          _
      $region52: #{tpu_custom_call.1} parent=5 // pred_fallthru
        _
    $region6: #{tpu_custom_call.1} parent=1 // loop_footer
      %s21 = sadd.s32 1, %s17
    $region7: #{tpu_custom_call.1} parent=1 // loop_footer_branch
      %16 = sbr.rel target = $region3
    $region8: #{tpu_custom_call.1} parent=1 // loop_exit
      _
    %564 = vsyncpa [#allocation4], 1
    %s565 = scalar_lea.sflag [#allocation4], 1
    %566 = vsyncpa %s565, 1
    %567 = vsyncpa [#allocation7], 1
    %568 = vsyncpa [#allocation5], 1
    %s569 = scalar_lea.sflag [#allocation5], 1
    %570 = vsyncpa %s569, 1

</llo_original>
